<compile_context>
chip_gen: v5e
topology: v5e:2x2
jax: 0.10.0
libtpu: 0.0.40
codegen_flags: <defaults>
</compile_context>

<pallas_src>
import jax
import jax.numpy as jnp
from jax.experimental import pallas as pl
from jax.experimental.pallas import tpu as pltpu

# ----------------------------- config ---------------------------------------
VOCAB = 100
SEQ = 8
HIDDEN = 32
FFN = 4 * HIDDEN
NUM_CLASSES = 4
NUM_TYPES = 2
LN_EPS = 1e-12
CLS_PAD = 128            # lane-dense padded classifier width


# ----------------------------- kernel ----------------------------------------
def _bert_classifier_kernel(
    # VMEM inputs
    x_ref,                      # (BB, S, H) summed embeddings (pre-LayerNorm)
    valid_ref,                  # (BB, 1) int32 valid lengths
    ln0_g, ln0_b,
    wqkv, bqkv,                 # fused (H, 3H), (1, 3H)
    wo, bo,
    ln1_g, ln1_b,
    w1, b1, w2, b2,
    ln2_g, ln2_b,
    wp, bp,
    wc, bc,                     # padded (H, CLS_PAD), (1, CLS_PAD)
    # output
    out_ref,                    # (BB, CLS_PAD)
):
    BB, S, H = x_ref.shape

    def layernorm(h, g_ref, b_ref):
        mu = jnp.mean(h, axis=-1, keepdims=True)
        var = jnp.mean(jnp.square(h - mu), axis=-1, keepdims=True)
        return (h - mu) * jax.lax.rsqrt(var + LN_EPS) * g_ref[...] + b_ref[...]

    # embedding LayerNorm over all BB*S token rows at once
    x = x_ref[...].reshape(BB * S, H)
    h0 = layernorm(x, ln0_g, ln0_b)

    # --- self attention (single head), fused QKV projection ---
    qkv = jnp.dot(h0, wqkv[...], preferred_element_type=jnp.float32) + bqkv[...]
    q = qkv[:, 0 * H:1 * H].reshape(BB, S, H)
    k = qkv[:, 1 * H:2 * H].reshape(BB, S, H)
    v = qkv[:, 2 * H:3 * H].reshape(BB, S, H)

    scores = jnp.einsum(
        "bqd,bkd->bqk", q, k, preferred_element_type=jnp.float32
    ) * (1.0 / (H ** 0.5))                                   # (BB, S, S)

    # attention mask built in-kernel from valid_length (mask[b, :v] = 1)
    valid = valid_ref[...].reshape(BB, 1, 1)                 # (BB, 1, 1) int32
    key_pos = jax.lax.broadcasted_iota(jnp.int32, (BB, S, S), 2)
    scores = jnp.where(key_pos < valid, scores, -1e9)

    scores = scores - jnp.max(scores, axis=-1, keepdims=True)
    p = jnp.exp(scores)
    p = p / jnp.sum(p, axis=-1, keepdims=True)

    ctx = jnp.einsum(
        "bqk,bkd->bqd", p, v, preferred_element_type=jnp.float32
    ).reshape(BB * S, H)
    attn = jnp.dot(ctx, wo[...], preferred_element_type=jnp.float32) + bo[...]
    h1 = layernorm(h0 + attn, ln1_g, ln1_b)

    # --- feed forward ---
    ff = jnp.dot(h1, w1[...], preferred_element_type=jnp.float32) + b1[...]
    # TODO(synk): reference BERT GELU is the exact erf form; tanh approx used.
    ff = jax.nn.gelu(ff, approximate=True)
    ff = jnp.dot(ff, w2[...], preferred_element_type=jnp.float32) + b2[...]
    h2 = layernorm(h1 + ff, ln2_g, ln2_b)

    # --- pooler: tanh(dense(CLS token)) over the whole batch at once ---
    cls = h2.reshape(BB, S, H)[:, 0, :]                      # (BB, H)
    pooled = jnp.tanh(
        jnp.dot(cls, wp[...], preferred_element_type=jnp.float32) + bp[...]
    )

    # nn.Dropout is identity at inference (module applies it only in training).
    # TODO(synk): training-mode dropout would need pltpu.prng_* (unsupported in
    # interpret mode), gated by a train flag.

    # --- classifier (lane-dense 128-wide padded output, single store) ---
    out_ref[...] = (
        jnp.dot(pooled, wc[...], preferred_element_type=jnp.float32) + bc[...]
    )


# ----------------------------- wrapper ----------------------------------------
def bert_classifier_forward(params, token_ids, valid_length, segment_ids):
    B, S = token_ids.shape
    H = params["word_emb"].shape[1]
    C = params["wc"].shape[1]

    # embedding gathers (glue, plain JAX)
    pos = jnp.arange(S, dtype=jnp.int32)
    x = (
        jnp.take(params["word_emb"], token_ids, axis=0)
        + jnp.take(params["pos_emb"], pos, axis=0)[None, :, :]
        + jnp.take(params["type_emb"], segment_ids.astype(jnp.int32), axis=0)
    ).astype(jnp.float32)

    valid = valid_length.astype(jnp.int32).reshape(B, 1)

    # batch tiling: whole batch per grid step when small, 16-seq tiles otherwise
    block_b = B if B <= 16 else 16
    b_pad = pl.cdiv(B, block_b) * block_b
    if b_pad != B:
        x = jnp.pad(x, ((0, b_pad - B), (0, 0), (0, 0)))
        valid = jnp.pad(valid, ((0, b_pad - B), (0, 0)), constant_values=1)

    # fold Q/K/V into one GEMM; pad classifier to 128 lanes (sliced back below)
    wqkv = jnp.concatenate([params["wq"], params["wk"], params["wv"]], axis=1)
    bqkv = jnp.concatenate([params["bq"], params["bk"], params["bv"]], axis=1)
    wc = jnp.pad(params["wc"], ((0, 0), (0, CLS_PAD - C)))
    bc = jnp.pad(params["bc"], ((0, 0), (0, CLS_PAD - C)))

    weights = [
        params["ln0_g"], params["ln0_b"],
        wqkv, bqkv,
        params["wo"], params["bo"],
        params["ln1_g"], params["ln1_b"],
        params["w1"], params["b1"], params["w2"], params["b2"],
        params["ln2_g"], params["ln2_b"],
        params["wp"], params["bp"],
        wc, bc,
    ]

    def full_spec(arr):
        # NOTE: at real KoBERT scale (H=768, 12 layers) stream per-layer weight
        # tiles (or pipeline_mode=pl.Buffered(1)) instead of keeping everything
        # double-buffered in VMEM — mandatory on v7x (64 MiB VMEM).
        n = arr.ndim
        return pl.BlockSpec(arr.shape, lambda *_i, _n=n: (0,) * _n)

    in_specs = [
        pl.BlockSpec((block_b, S, H), lambda i: (i, 0, 0)),
        pl.BlockSpec((block_b, 1), lambda i: (i, 0)),
    ] + [full_spec(w) for w in weights]

    out = pl.pallas_call(
        _bert_classifier_kernel,
        out_shape=jax.ShapeDtypeStruct((b_pad, CLS_PAD), jnp.float32),
        grid_spec=pltpu.PrefetchScalarGridSpec(
            num_scalar_prefetch=0,
            grid=(b_pad // block_b,),
            in_specs=in_specs,
            out_specs=pl.BlockSpec((block_b, CLS_PAD), lambda i: (i, 0)),
        ),
        compiler_params=pltpu.CompilerParams(
            dimension_semantics=("parallel",)),
    )(x, valid, *weights)

    return out[:B, :C]


# ----------------------------- params -----------------------------------------
def init_params(key):
    ks = jax.random.split(key, 12)

    def dense(k, fi, fo):
        return jax.random.normal(k, (fi, fo), jnp.float32) * 0.02

    H, F, C = HIDDEN, FFN, NUM_CLASSES
    p = {
        "word_emb": jax.random.normal(ks[0], (VOCAB, H), jnp.float32) * 0.02,
        "pos_emb": jax.random.normal(ks[1], (SEQ, H), jnp.float32) * 0.02,
        "type_emb": jax.random.normal(ks[2], (NUM_TYPES, H), jnp.float32) * 0.02,
        "ln0_g": jnp.ones((1, H), jnp.float32), "ln0_b": jnp.zeros((1, H), jnp.float32),
        "wq": dense(ks[3], H, H), "bq": jnp.zeros((1, H), jnp.float32),
        "wk": dense(ks[4], H, H), "bk": jnp.zeros((1, H), jnp.float32),
        "wv": dense(ks[5], H, H), "bv": jnp.zeros((1, H), jnp.float32),
        "wo": dense(ks[6], H, H), "bo": jnp.zeros((1, H), jnp.float32),
        "ln1_g": jnp.ones((1, H), jnp.float32), "ln1_b": jnp.zeros((1, H), jnp.float32),
        "w1": dense(ks[7], H, F), "b1": jnp.zeros((1, F), jnp.float32),
        "w2": dense(ks[8], F, H), "b2": jnp.zeros((1, H), jnp.float32),
        "ln2_g": jnp.ones((1, H), jnp.float32), "ln2_b": jnp.zeros((1, H), jnp.float32),
        "wp": dense(ks[9], H, H), "bp": jnp.zeros((1, H), jnp.float32),
        "wc": dense(ks[10], H, C), "bc": jnp.zeros((1, C), jnp.float32),
    }
    return p


# ----------------------------- main --------------------------------------------
if __name__ == "__main__":
    key = jax.random.PRNGKey(0)
    kp, kt = jax.random.split(key)
    params = init_params(kp)

    B, S = 2, SEQ
    token_ids = jax.random.randint(kt, (B, S), 0, VOCAB, dtype=jnp.int32)
    segment_ids = jnp.zeros((B, S), jnp.int32)
    valid_length = jnp.array([5, 8], jnp.int32)

    logits = bert_classifier_forward(params, token_ids, valid_length, segment_ids)
    logits = jax.block_until_ready(logits)
    assert logits.shape == (B, NUM_CLASSES)
    assert bool(jnp.all(jnp.isfinite(logits)))
    # TODO(synk): pretrained multi-layer / multi-head KoBERT backbone is external;
    # a deterministic 1-layer, 1-head encoder is substituted here.
    print("KERNEL_OK")
</pallas_src>

<mosaic_0001>
module attributes {stable_mosaic.version = 11 : i64} {
  func.func @_bert_classifier_kernel(%arg0: i32, %arg1: memref<2x8x32xf32, #tpu.memory_space<vmem>>, %arg2: memref<2x1xi32, #tpu.memory_space<vmem>>, %arg3: memref<1x32xf32, #tpu.memory_space<vmem>>, %arg4: memref<1x32xf32, #tpu.memory_space<vmem>>, %arg5: memref<32x96xf32, #tpu.memory_space<vmem>>, %arg6: memref<1x96xf32, #tpu.memory_space<vmem>>, %arg7: memref<32x32xf32, #tpu.memory_space<vmem>>, %arg8: memref<1x32xf32, #tpu.memory_space<vmem>>, %arg9: memref<1x32xf32, #tpu.memory_space<vmem>>, %arg10: memref<1x32xf32, #tpu.memory_space<vmem>>, %arg11: memref<32x128xf32, #tpu.memory_space<vmem>>, %arg12: memref<1x128xf32, #tpu.memory_space<vmem>>, %arg13: memref<128x32xf32, #tpu.memory_space<vmem>>, %arg14: memref<1x32xf32, #tpu.memory_space<vmem>>, %arg15: memref<1x32xf32, #tpu.memory_space<vmem>>, %arg16: memref<1x32xf32, #tpu.memory_space<vmem>>, %arg17: memref<32x32xf32, #tpu.memory_space<vmem>>, %arg18: memref<1x32xf32, #tpu.memory_space<vmem>>, %arg19: memref<32x128xf32, #tpu.memory_space<vmem>>, %arg20: memref<1x128xf32, #tpu.memory_space<vmem>>, %arg21: memref<2x128xf32, #tpu.memory_space<vmem>>) attributes {dimension_semantics = [#tpu.dimension_semantics<parallel>], iteration_bounds = array<i64: 1>, scalar_prefetch = 0 : i64, scratch_operands = 0 : i64, tpu.core_type = #tpu.core_type<tc>, window_params = [{transform_indices = @transform_0, window_bounds = array<i64: 2, 8, 32>}, {transform_indices = @transform_1, window_bounds = array<i64: 2, 1>}, {pipeline_mode = #tpu.pipeline_mode<synchronous>, transform_indices = @transform_2, window_bounds = array<i64: 1, 32>}, {pipeline_mode = #tpu.pipeline_mode<synchronous>, transform_indices = @transform_3, window_bounds = array<i64: 1, 32>}, {pipeline_mode = #tpu.pipeline_mode<synchronous>, transform_indices = @transform_4, window_bounds = array<i64: 32, 96>}, {pipeline_mode = #tpu.pipeline_mode<synchronous>, transform_indices = @transform_5, window_bounds = array<i64: 1, 96>}, {pipeline_mode = #tpu.pipeline_mode<synchronous>, transform_indices = @transform_6, window_bounds = array<i64: 32, 32>}, {pipeline_mode = #tpu.pipeline_mode<synchronous>, transform_indices = @transform_7, window_bounds = array<i64: 1, 32>}, {pipeline_mode = #tpu.pipeline_mode<synchronous>, transform_indices = @transform_8, window_bounds = array<i64: 1, 32>}, {pipeline_mode = #tpu.pipeline_mode<synchronous>, transform_indices = @transform_9, window_bounds = array<i64: 1, 32>}, {pipeline_mode = #tpu.pipeline_mode<synchronous>, transform_indices = @transform_10, window_bounds = array<i64: 32, 128>}, {pipeline_mode = #tpu.pipeline_mode<synchronous>, transform_indices = @transform_11, window_bounds = array<i64: 1, 128>}, {pipeline_mode = #tpu.pipeline_mode<synchronous>, transform_indices = @transform_12, window_bounds = array<i64: 128, 32>}, {pipeline_mode = #tpu.pipeline_mode<synchronous>, transform_indices = @transform_13, window_bounds = array<i64: 1, 32>}, {pipeline_mode = #tpu.pipeline_mode<synchronous>, transform_indices = @transform_14, window_bounds = array<i64: 1, 32>}, {pipeline_mode = #tpu.pipeline_mode<synchronous>, transform_indices = @transform_15, window_bounds = array<i64: 1, 32>}, {pipeline_mode = #tpu.pipeline_mode<synchronous>, transform_indices = @transform_16, window_bounds = array<i64: 32, 32>}, {pipeline_mode = #tpu.pipeline_mode<synchronous>, transform_indices = @transform_17, window_bounds = array<i64: 1, 32>}, {pipeline_mode = #tpu.pipeline_mode<synchronous>, transform_indices = @transform_18, window_bounds = array<i64: 32, 128>}, {pipeline_mode = #tpu.pipeline_mode<synchronous>, transform_indices = @transform_19, window_bounds = array<i64: 1, 128>}, {transform_indices = @transform_20, window_bounds = array<i64: 2, 128>}]} {
    %c0 = arith.constant 0 : index
    %c0_0 = arith.constant 0 : index
    %c0_1 = arith.constant 0 : index
    %0 = vector.load %arg1[%c0, %c0_0, %c0_1] : memref<2x8x32xf32, #tpu.memory_space<vmem>>, vector<2x8x32xf32>
    %1 = vector.shape_cast %0 : vector<2x8x32xf32> to vector<16x32xf32>
    %cst = arith.constant dense<0.000000e+00> : vector<16xf32>
    %2 = vector.multi_reduction <add>, %1, %cst [1] : vector<16x32xf32> to vector<16xf32>
    %3 = vector.shape_cast %2 : vector<16xf32> to vector<16x1xf32>
    %cst_2 = arith.constant 3.200000e+01 : f32
    %4 = vector.broadcast %cst_2 : f32 to vector<16x1xf32>
    %5 = arith.divf %3, %4 : vector<16x1xf32>
    %6 = vector.broadcast %5 : vector<16x1xf32> to vector<16x32xf32>
    %7 = arith.subf %1, %6 : vector<16x32xf32>
    %8 = arith.mulf %7, %7 : vector<16x32xf32>
    %cst_3 = arith.constant dense<0.000000e+00> : vector<16xf32>
    %9 = vector.multi_reduction <add>, %8, %cst_3 [1] : vector<16x32xf32> to vector<16xf32>
    %10 = vector.shape_cast %9 : vector<16xf32> to vector<16x1xf32>
    %cst_4 = arith.constant 3.200000e+01 : f32
    %11 = vector.broadcast %cst_4 : f32 to vector<16x1xf32>
    %12 = arith.divf %10, %11 : vector<16x1xf32>
    %13 = vector.broadcast %5 : vector<16x1xf32> to vector<16x32xf32>
    %14 = arith.subf %1, %13 : vector<16x32xf32>
    %cst_5 = arith.constant 9.99999996E-13 : f32
    %15 = vector.broadcast %cst_5 : f32 to vector<16x1xf32>
    %16 = arith.addf %12, %15 : vector<16x1xf32>
    %17 = math.rsqrt %16 : vector<16x1xf32>
    %18 = vector.broadcast %17 : vector<16x1xf32> to vector<16x32xf32>
    %19 = arith.mulf %14, %18 : vector<16x32xf32>
    %c0_6 = arith.constant 0 : index
    %c0_7 = arith.constant 0 : index
    %20 = vector.load %arg3[%c0_6, %c0_7] : memref<1x32xf32, #tpu.memory_space<vmem>>, vector<1x32xf32>
    %21 = vector.broadcast %20 : vector<1x32xf32> to vector<16x32xf32>
    %22 = arith.mulf %19, %21 : vector<16x32xf32>
    %c0_8 = arith.constant 0 : index
    %c0_9 = arith.constant 0 : index
    %23 = vector.load %arg4[%c0_8, %c0_9] : memref<1x32xf32, #tpu.memory_space<vmem>>, vector<1x32xf32>
    %24 = vector.broadcast %23 : vector<1x32xf32> to vector<16x32xf32>
    %25 = arith.addf %22, %24 : vector<16x32xf32>
    %c0_10 = arith.constant 0 : index
    %c0_11 = arith.constant 0 : index
    %26 = vector.load %arg5[%c0_10, %c0_11] : memref<32x96xf32, #tpu.memory_space<vmem>>, vector<32x96xf32>
    %cst_12 = arith.constant dense<0.000000e+00> : vector<16x96xf32>
    %27 = tpu.matmul %25, %26, %cst_12 {dimension_numbers = #tpu.dot_dimension_numbers<[1], [0], [0], [1], [0, 0, 1, 1], [], []>} : vector<16x32xf32>, vector<32x96xf32>, vector<16x96xf32> -> vector<16x96xf32>
    %c0_13 = arith.constant 0 : index
    %c0_14 = arith.constant 0 : index
    %28 = vector.load %arg6[%c0_13, %c0_14] : memref<1x96xf32, #tpu.memory_space<vmem>>, vector<1x96xf32>
    %29 = vector.broadcast %28 : vector<1x96xf32> to vector<16x96xf32>
    %30 = arith.addf %27, %29 : vector<16x96xf32>
    %31 = vector.extract_strided_slice %30 {offsets = [0, 0], sizes = [16, 32], strides = [1, 1]} : vector<16x96xf32> to vector<16x32xf32>
    %32 = vector.shape_cast %31 : vector<16x32xf32> to vector<2x8x32xf32>
    %33 = vector.extract_strided_slice %30 {offsets = [0, 32], sizes = [16, 32], strides = [1, 1]} : vector<16x96xf32> to vector<16x32xf32>
    %34 = vector.shape_cast %33 : vector<16x32xf32> to vector<2x8x32xf32>
    %35 = vector.extract_strided_slice %30 {offsets = [0, 64], sizes = [16, 32], strides = [1, 1]} : vector<16x96xf32> to vector<16x32xf32>
    %36 = vector.shape_cast %35 : vector<16x32xf32> to vector<2x8x32xf32>
    "tpu.trace_start"() <{level = 10 : i32, message = "bqd,bkd->bqk"}> : () -> ()
    %cst_15 = arith.constant dense<0.000000e+00> : vector<2x8x8xf32>
    %37 = tpu.matmul %32, %34, %cst_15 {dimension_numbers = #tpu.dot_dimension_numbers<[2], [2], [1], [1], [0, 0, 0, 1, 1, 1], [0], [0]>} : vector<2x8x32xf32>, vector<2x8x32xf32>, vector<2x8x8xf32> -> vector<2x8x8xf32>
    "tpu.trace_stop"() : () -> ()
    %cst_16 = arith.constant 0.176776692 : f32
    %38 = vector.broadcast %cst_16 : f32 to vector<2x8x8xf32>
    %39 = arith.mulf %37, %38 : vector<2x8x8xf32>
    %c0_17 = arith.constant 0 : index
    %c0_18 = arith.constant 0 : index
    %40 = vector.load %arg2[%c0_17, %c0_18] : memref<2x1xi32, #tpu.memory_space<vmem>>, vector<2x1xi32>
    %41 = vector.shape_cast %40 : vector<2x1xi32> to vector<2x1x1xi32>
    %42 = tpu.iota {dimensions = array<i32: 2>} : vector<2x8x8xi32>
    %43 = vector.broadcast %41 : vector<2x1x1xi32> to vector<2x8x8xi32>
    %44 = arith.cmpi slt, %42, %43 : vector<2x8x8xi32>
    %cst_19 = arith.constant -1.000000e+09 : f32
    %45 = vector.broadcast %cst_19 : f32 to vector<2x8x8xf32>
    %46 = arith.select %44, %39, %45 : vector<2x8x8xi1>, vector<2x8x8xf32>
    %cst_20 = arith.constant dense<0xFF800000> : vector<2x8xf32>
    %47 = vector.multi_reduction <maximumf>, %46, %cst_20 [2] : vector<2x8x8xf32> to vector<2x8xf32>
    %48 = vector.shape_cast %47 : vector<2x8xf32> to vector<2x8x1xf32>
    %49 = vector.broadcast %48 : vector<2x8x1xf32> to vector<2x8x8xf32>
    %50 = arith.subf %46, %49 : vector<2x8x8xf32>
    %51 = math.exp %50 : vector<2x8x8xf32>
    %cst_21 = arith.constant dense<0.000000e+00> : vector<2x8xf32>
    %52 = vector.multi_reduction <add>, %51, %cst_21 [2] : vector<2x8x8xf32> to vector<2x8xf32>
    %53 = vector.shape_cast %52 : vector<2x8xf32> to vector<2x8x1xf32>
    %54 = vector.broadcast %53 : vector<2x8x1xf32> to vector<2x8x8xf32>
    %55 = arith.divf %51, %54 : vector<2x8x8xf32>
    "tpu.trace_start"() <{level = 10 : i32, message = "bqk,bkd->bqd"}> : () -> ()
    %cst_22 = arith.constant dense<0.000000e+00> : vector<2x8x32xf32>
    %56 = tpu.matmul %55, %36, %cst_22 {dimension_numbers = #tpu.dot_dimension_numbers<[2], [1], [1], [2], [0, 0, 0, 1, 1, 2], [0], [0]>} : vector<2x8x8xf32>, vector<2x8x32xf32>, vector<2x8x32xf32> -> vector<2x8x32xf32>
    "tpu.trace_stop"() : () -> ()
    %57 = vector.shape_cast %56 : vector<2x8x32xf32> to vector<16x32xf32>
    %c0_23 = arith.constant 0 : index
    %c0_24 = arith.constant 0 : index
    %58 = vector.load %arg7[%c0_23, %c0_24] : memref<32x32xf32, #tpu.memory_space<vmem>>, vector<32x32xf32>
    %cst_25 = arith.constant dense<0.000000e+00> : vector<16x32xf32>
    %59 = tpu.matmul %57, %58, %cst_25 {dimension_numbers = #tpu.dot_dimension_numbers<[1], [0], [0], [1], [0, 0, 1, 1], [], []>} : vector<16x32xf32>, vector<32x32xf32>, vector<16x32xf32> -> vector<16x32xf32>
    %c0_26 = arith.constant 0 : index
    %c0_27 = arith.constant 0 : index
    %60 = vector.load %arg8[%c0_26, %c0_27] : memref<1x32xf32, #tpu.memory_space<vmem>>, vector<1x32xf32>
    %61 = vector.broadcast %60 : vector<1x32xf32> to vector<16x32xf32>
    %62 = arith.addf %59, %61 : vector<16x32xf32>
    %63 = arith.addf %25, %62 : vector<16x32xf32>
    %cst_28 = arith.constant dense<0.000000e+00> : vector<16xf32>
    %64 = vector.multi_reduction <add>, %63, %cst_28 [1] : vector<16x32xf32> to vector<16xf32>
    %65 = vector.shape_cast %64 : vector<16xf32> to vector<16x1xf32>
    %cst_29 = arith.constant 3.200000e+01 : f32
    %66 = vector.broadcast %cst_29 : f32 to vector<16x1xf32>
    %67 = arith.divf %65, %66 : vector<16x1xf32>
    %68 = vector.broadcast %67 : vector<16x1xf32> to vector<16x32xf32>
    %69 = arith.subf %63, %68 : vector<16x32xf32>
    %70 = arith.mulf %69, %69 : vector<16x32xf32>
    %cst_30 = arith.constant dense<0.000000e+00> : vector<16xf32>
    %71 = vector.multi_reduction <add>, %70, %cst_30 [1] : vector<16x32xf32> to vector<16xf32>
    %72 = vector.shape_cast %71 : vector<16xf32> to vector<16x1xf32>
    %cst_31 = arith.constant 3.200000e+01 : f32
    %73 = vector.broadcast %cst_31 : f32 to vector<16x1xf32>
    %74 = arith.divf %72, %73 : vector<16x1xf32>
    %75 = vector.broadcast %67 : vector<16x1xf32> to vector<16x32xf32>
    %76 = arith.subf %63, %75 : vector<16x32xf32>
    %cst_32 = arith.constant 9.99999996E-13 : f32
    %77 = vector.broadcast %cst_32 : f32 to vector<16x1xf32>
    %78 = arith.addf %74, %77 : vector<16x1xf32>
    %79 = math.rsqrt %78 : vector<16x1xf32>
    %80 = vector.broadcast %79 : vector<16x1xf32> to vector<16x32xf32>
    %81 = arith.mulf %76, %80 : vector<16x32xf32>
    %c0_33 = arith.constant 0 : index
    %c0_34 = arith.constant 0 : index
    %82 = vector.load %arg9[%c0_33, %c0_34] : memref<1x32xf32, #tpu.memory_space<vmem>>, vector<1x32xf32>
    %83 = vector.broadcast %82 : vector<1x32xf32> to vector<16x32xf32>
    %84 = arith.mulf %81, %83 : vector<16x32xf32>
    %c0_35 = arith.constant 0 : index
    %c0_36 = arith.constant 0 : index
    %85 = vector.load %arg10[%c0_35, %c0_36] : memref<1x32xf32, #tpu.memory_space<vmem>>, vector<1x32xf32>
    %86 = vector.broadcast %85 : vector<1x32xf32> to vector<16x32xf32>
    %87 = arith.addf %84, %86 : vector<16x32xf32>
    %c0_37 = arith.constant 0 : index
    %c0_38 = arith.constant 0 : index
    %88 = vector.load %arg11[%c0_37, %c0_38] : memref<32x128xf32, #tpu.memory_space<vmem>>, vector<32x128xf32>
    %cst_39 = arith.constant dense<0.000000e+00> : vector<16x128xf32>
    %89 = tpu.matmul %87, %88, %cst_39 {dimension_numbers = #tpu.dot_dimension_numbers<[1], [0], [0], [1], [0, 0, 1, 1], [], []>} : vector<16x32xf32>, vector<32x128xf32>, vector<16x128xf32> -> vector<16x128xf32>
    %c0_40 = arith.constant 0 : index
    %c0_41 = arith.constant 0 : index
    %90 = vector.load %arg12[%c0_40, %c0_41] : memref<1x128xf32, #tpu.memory_space<vmem>>, vector<1x128xf32>
    %91 = vector.broadcast %90 : vector<1x128xf32> to vector<16x128xf32>
    %92 = arith.addf %89, %91 : vector<16x128xf32>
    %93 = arith.mulf %92, %92 : vector<16x128xf32>
    %94 = arith.mulf %92, %93 : vector<16x128xf32>
    %cst_42 = arith.constant 4.471500e-02 : f32
    %95 = vector.broadcast %cst_42 : f32 to vector<16x128xf32>
    %96 = arith.mulf %95, %94 : vector<16x128xf32>
    %97 = arith.addf %92, %96 : vector<16x128xf32>
    %cst_43 = arith.constant 0.797884583 : f32
    %98 = vector.broadcast %cst_43 : f32 to vector<16x128xf32>
    %99 = arith.mulf %98, %97 : vector<16x128xf32>
    %100 = math.tanh %99 : vector<16x128xf32>
    %cst_44 = arith.constant 1.000000e+00 : f32
    %101 = vector.broadcast %cst_44 : f32 to vector<16x128xf32>
    %102 = arith.addf %101, %100 : vector<16x128xf32>
    %cst_45 = arith.constant 5.000000e-01 : f32
    %103 = vector.broadcast %cst_45 : f32 to vector<16x128xf32>
    %104 = arith.mulf %103, %102 : vector<16x128xf32>
    %105 = arith.mulf %92, %104 : vector<16x128xf32>
    %c0_46 = arith.constant 0 : index
    %c0_47 = arith.constant 0 : index
    %106 = vector.load %arg13[%c0_46, %c0_47] : memref<128x32xf32, #tpu.memory_space<vmem>>, vector<128x32xf32>
    %cst_48 = arith.constant dense<0.000000e+00> : vector<16x32xf32>
    %107 = tpu.matmul %105, %106, %cst_48 {dimension_numbers = #tpu.dot_dimension_numbers<[1], [0], [0], [1], [0, 0, 1, 1], [], []>} : vector<16x128xf32>, vector<128x32xf32>, vector<16x32xf32> -> vector<16x32xf32>
    %c0_49 = arith.constant 0 : index
    %c0_50 = arith.constant 0 : index
    %108 = vector.load %arg14[%c0_49, %c0_50] : memref<1x32xf32, #tpu.memory_space<vmem>>, vector<1x32xf32>
    %109 = vector.broadcast %108 : vector<1x32xf32> to vector<16x32xf32>
    %110 = arith.addf %107, %109 : vector<16x32xf32>
    %111 = arith.addf %87, %110 : vector<16x32xf32>
    %cst_51 = arith.constant dense<0.000000e+00> : vector<16xf32>
    %112 = vector.multi_reduction <add>, %111, %cst_51 [1] : vector<16x32xf32> to vector<16xf32>
    %113 = vector.shape_cast %112 : vector<16xf32> to vector<16x1xf32>
    %cst_52 = arith.constant 3.200000e+01 : f32
    %114 = vector.broadcast %cst_52 : f32 to vector<16x1xf32>
    %115 = arith.divf %113, %114 : vector<16x1xf32>
    %116 = vector.broadcast %115 : vector<16x1xf32> to vector<16x32xf32>
    %117 = arith.subf %111, %116 : vector<16x32xf32>
    %118 = arith.mulf %117, %117 : vector<16x32xf32>
    %cst_53 = arith.constant dense<0.000000e+00> : vector<16xf32>
    %119 = vector.multi_reduction <add>, %118, %cst_53 [1] : vector<16x32xf32> to vector<16xf32>
    %120 = vector.shape_cast %119 : vector<16xf32> to vector<16x1xf32>
    %cst_54 = arith.constant 3.200000e+01 : f32
    %121 = vector.broadcast %cst_54 : f32 to vector<16x1xf32>
    %122 = arith.divf %120, %121 : vector<16x1xf32>
    %123 = vector.broadcast %115 : vector<16x1xf32> to vector<16x32xf32>
    %124 = arith.subf %111, %123 : vector<16x32xf32>
    %cst_55 = arith.constant 9.99999996E-13 : f32
    %125 = vector.broadcast %cst_55 : f32 to vector<16x1xf32>
    %126 = arith.addf %122, %125 : vector<16x1xf32>
    %127 = math.rsqrt %126 : vector<16x1xf32>
    %128 = vector.broadcast %127 : vector<16x1xf32> to vector<16x32xf32>
    %129 = arith.mulf %124, %128 : vector<16x32xf32>
    %c0_56 = arith.constant 0 : index
    %c0_57 = arith.constant 0 : index
    %130 = vector.load %arg15[%c0_56, %c0_57] : memref<1x32xf32, #tpu.memory_space<vmem>>, vector<1x32xf32>
    %131 = vector.broadcast %130 : vector<1x32xf32> to vector<16x32xf32>
    %132 = arith.mulf %129, %131 : vector<16x32xf32>
    %c0_58 = arith.constant 0 : index
    %c0_59 = arith.constant 0 : index
    %133 = vector.load %arg16[%c0_58, %c0_59] : memref<1x32xf32, #tpu.memory_space<vmem>>, vector<1x32xf32>
    %134 = vector.broadcast %133 : vector<1x32xf32> to vector<16x32xf32>
    %135 = arith.addf %132, %134 : vector<16x32xf32>
    %136 = vector.shape_cast %135 : vector<16x32xf32> to vector<2x8x32xf32>
    %137 = vector.extract_strided_slice %136 {offsets = [0, 0, 0], sizes = [2, 1, 32], strides = [1, 1, 1]} : vector<2x8x32xf32> to vector<2x1x32xf32>
    %138 = vector.shape_cast %137 : vector<2x1x32xf32> to vector<2x32xf32>
    %c0_60 = arith.constant 0 : index
    %c0_61 = arith.constant 0 : index
    %139 = vector.load %arg17[%c0_60, %c0_61] : memref<32x32xf32, #tpu.memory_space<vmem>>, vector<32x32xf32>
    %cst_62 = arith.constant dense<0.000000e+00> : vector<2x32xf32>
    %140 = tpu.matmul %138, %139, %cst_62 {dimension_numbers = #tpu.dot_dimension_numbers<[1], [0], [0], [1], [0, 0, 1, 1], [], []>} : vector<2x32xf32>, vector<32x32xf32>, vector<2x32xf32> -> vector<2x32xf32>
    %c0_63 = arith.constant 0 : index
    %c0_64 = arith.constant 0 : index
    %141 = vector.load %arg18[%c0_63, %c0_64] : memref<1x32xf32, #tpu.memory_space<vmem>>, vector<1x32xf32>
    %142 = vector.broadcast %141 : vector<1x32xf32> to vector<2x32xf32>
    %143 = arith.addf %140, %142 : vector<2x32xf32>
    %144 = math.tanh %143 : vector<2x32xf32>
    %c0_65 = arith.constant 0 : index
    %c0_66 = arith.constant 0 : index
    %145 = vector.load %arg19[%c0_65, %c0_66] : memref<32x128xf32, #tpu.memory_space<vmem>>, vector<32x128xf32>
    %cst_67 = arith.constant dense<0.000000e+00> : vector<2x128xf32>
    %146 = tpu.matmul %144, %145, %cst_67 {dimension_numbers = #tpu.dot_dimension_numbers<[1], [0], [0], [1], [0, 0, 1, 1], [], []>} : vector<2x32xf32>, vector<32x128xf32>, vector<2x128xf32> -> vector<2x128xf32>
    %c0_68 = arith.constant 0 : index
    %c0_69 = arith.constant 0 : index
    %147 = vector.load %arg20[%c0_68, %c0_69] : memref<1x128xf32, #tpu.memory_space<vmem>>, vector<1x128xf32>
    %148 = vector.broadcast %147 : vector<1x128xf32> to vector<2x128xf32>
    %149 = arith.addf %146, %148 : vector<2x128xf32>
    %c0_70 = arith.constant 0 : index
    %c0_71 = arith.constant 0 : index
    %150 = vector.load %arg21[%c0_70, %c0_71] : memref<2x128xf32, #tpu.memory_space<vmem>>, vector<2x128xf32>
    tpu.vector_store %arg21[%c0_70, %c0_71], %149 {strides = array<i32>} : memref<2x128xf32, #tpu.memory_space<vmem>>, vector<2x128xf32>,
    return
  }
  func.func @transform_0(%arg0: i32) -> (i32, i32, i32) {
    %c0_i32 = arith.constant 0 : i32
    %c0_i32_0 = arith.constant 0 : i32
    %c0_i32_1 = arith.constant 0 : i32
    return %arg0, %c0_i32, %c0_i32_0 : i32, i32, i32
  }
  func.func @transform_1(%arg0: i32) -> (i32, i32) {
    %c0_i32 = arith.constant 0 : i32
    %c0_i32_0 = arith.constant 0 : i32
    return %arg0, %c0_i32 : i32, i32
  }
  func.func @transform_2(%arg0: i32) -> (i32, i32) {
    %c0_i32 = arith.constant 0 : i32
    %c0_i32_0 = arith.constant 0 : i32
    %c0_i32_1 = arith.constant 0 : i32
    return %c0_i32, %c0_i32_0 : i32, i32
  }
  func.func @transform_3(%arg0: i32) -> (i32, i32) {
    %c0_i32 = arith.constant 0 : i32
    %c0_i32_0 = arith.constant 0 : i32
    %c0_i32_1 = arith.constant 0 : i32
    return %c0_i32, %c0_i32_0 : i32, i32
  }
  func.func @transform_4(%arg0: i32) -> (i32, i32) {
    %c0_i32 = arith.constant 0 : i32
    %c0_i32_0 = arith.constant 0 : i32
    %c0_i32_1 = arith.constant 0 : i32
    return %c0_i32, %c0_i32_0 : i32, i32
  }
  func.func @transform_5(%arg0: i32) -> (i32, i32) {
    %c0_i32 = arith.constant 0 : i32
    %c0_i32_0 = arith.constant 0 : i32
    %c0_i32_1 = arith.constant 0 : i32
    return %c0_i32, %c0_i32_0 : i32, i32
  }
  func.func @transform_6(%arg0: i32) -> (i32, i32) {
    %c0_i32 = arith.constant 0 : i32
    %c0_i32_0 = arith.constant 0 : i32
    %c0_i32_1 = arith.constant 0 : i32
    return %c0_i32, %c0_i32_0 : i32, i32
  }
  func.func @transform_7(%arg0: i32) -> (i32, i32) {
    %c0_i32 = arith.constant 0 : i32
    %c0_i32_0 = arith.constant 0 : i32
    %c0_i32_1 = arith.constant 0 : i32
    return %c0_i32, %c0_i32_0 : i32, i32
  }
  func.func @transform_8(%arg0: i32) -> (i32, i32) {
    %c0_i32 = arith.constant 0 : i32
    %c0_i32_0 = arith.constant 0 : i32
    %c0_i32_1 = arith.constant 0 : i32
    return %c0_i32, %c0_i32_0 : i32, i32
  }
  func.func @transform_9(%arg0: i32) -> (i32, i32) {
    %c0_i32 = arith.constant 0 : i32
    %c0_i32_0 = arith.constant 0 : i32
    %c0_i32_1 = arith.constant 0 : i32
    return %c0_i32, %c0_i32_0 : i32, i32
  }
  func.func @transform_10(%arg0: i32) -> (i32, i32) {
    %c0_i32 = arith.constant 0 : i32
    %c0_i32_0 = arith.constant 0 : i32
    %c0_i32_1 = arith.constant 0 : i32
    return %c0_i32, %c0_i32_0 : i32, i32
  }
  func.func @transform_11(%arg0: i32) -> (i32, i32) {
    %c0_i32 = arith.constant 0 : i32
    %c0_i32_0 = arith.constant 0 : i32
    %c0_i32_1 = arith.constant 0 : i32
    return %c0_i32, %c0_i32_0 : i32, i32
  }
  func.func @transform_12(%arg0: i32) -> (i32, i32) {
    %c0_i32 = arith.constant 0 : i32
    %c0_i32_0 = arith.constant 0 : i32
    %c0_i32_1 = arith.constant 0 : i32
    return %c0_i32, %c0_i32_0 : i32, i32
  }
  func.func @transform_13(%arg0: i32) -> (i32, i32) {
    %c0_i32 = arith.constant 0 : i32
    %c0_i32_0 = arith.constant 0 : i32
    %c0_i32_1 = arith.constant 0 : i32
    return %c0_i32, %c0_i32_0 : i32, i32
  }
  func.func @transform_14(%arg0: i32) -> (i32, i32) {
    %c0_i32 = arith.constant 0 : i32
    %c0_i32_0 = arith.constant 0 : i32
    %c0_i32_1 = arith.constant 0 : i32
    return %c0_i32, %c0_i32_0 : i32, i32
  }
  func.func @transform_15(%arg0: i32) -> (i32, i32) {
    %c0_i32 = arith.constant 0 : i32
    %c0_i32_0 = arith.constant 0 : i32
    %c0_i32_1 = arith.constant 0 : i32
    return %c0_i32, %c0_i32_0 : i32, i32
  }
  func.func @transform_16(%arg0: i32) -> (i32, i32) {
    %c0_i32 = arith.constant 0 : i32
    %c0_i32_0 = arith.constant 0 : i32
    %c0_i32_1 = arith.constant 0 : i32
    return %c0_i32, %c0_i32_0 : i32, i32
  }
  func.func @transform_17(%arg0: i32) -> (i32, i32) {
    %c0_i32 = arith.constant 0 : i32
    %c0_i32_0 = arith.constant 0 : i32
    %c0_i32_1 = arith.constant 0 : i32
    return %c0_i32, %c0_i32_0 : i32, i32
  }
  func.func @transform_18(%arg0: i32) -> (i32, i32) {
    %c0_i32 = arith.constant 0 : i32
    %c0_i32_0 = arith.constant 0 : i32
    %c0_i32_1 = arith.constant 0 : i32
    return %c0_i32, %c0_i32_0 : i32, i32
  }
  func.func @transform_19(%arg0: i32) -> (i32, i32) {
    %c0_i32 = arith.constant 0 : i32
    %c0_i32_0 = arith.constant 0 : i32
    %c0_i32_1 = arith.constant 0 : i32
    return %c0_i32, %c0_i32_0 : i32, i32
  }
  func.func @transform_20(%arg0: i32) -> (i32, i32) {
    %c0_i32 = arith.constant 0 : i32
    %c0_i32_0 = arith.constant 0 : i32
    return %arg0, %c0_i32 : i32, i32
  }
}

</mosaic_0001>

<llo_original>
// kernel: tpu_custom_call.1
$region0: #{tpu_custom_call.1}
  #allocation0 [shape = 'u32[]', space=smem, size = 0x4, offset = 0x4, fixed_abs, tag = 'smem constant byte address 0x4 - core index']
  #allocation1 [shape = 'u32[72,128]{1,0:T(1,128)}', space=vmem, size = 0x9000, scoped, tag = 'internal scratch']
  %s0 = inlined_call_operand.hbm [shape: f32[2,8,32], index: 0, kind: input, shape index: {}]
  %s1 = inlined_call_operand.vmem [shape: s32[2,1], index: 1, kind: input, shape index: {}]
  %s2 = inlined_call_operand.vmem [shape: f32[1,32], index: 2, kind: input, shape index: {}]
  %s3 = inlined_call_operand.vmem [shape: f32[1,32], index: 3, kind: input, shape index: {}]
  %s4 = inlined_call_operand.vmem [shape: f32[32,96], index: 4, kind: input, shape index: {}]
  %s5 = inlined_call_operand.vmem [shape: f32[1,96], index: 5, kind: input, shape index: {}]
  %s6 = inlined_call_operand.vmem [shape: f32[32,32], index: 6, kind: input, shape index: {}]
  %s7 = inlined_call_operand.vmem [shape: f32[1,32], index: 7, kind: input, shape index: {}]
  %s8 = inlined_call_operand.vmem [shape: f32[1,32], index: 8, kind: input, shape index: {}]
  %s9 = inlined_call_operand.vmem [shape: f32[1,32], index: 9, kind: input, shape index: {}]
  %s10 = inlined_call_operand.vmem [shape: f32[32,128], index: 10, kind: input, shape index: {}]
  %s11 = inlined_call_operand.vmem [shape: f32[1,128], index: 11, kind: input, shape index: {}]
  %s12 = inlined_call_operand.vmem [shape: f32[128,32], index: 12, kind: input, shape index: {}]
  %s13 = inlined_call_operand.vmem [shape: f32[1,32], index: 13, kind: input, shape index: {}]
  %s14 = inlined_call_operand.vmem [shape: f32[1,32], index: 14, kind: input, shape index: {}]
  %s15 = inlined_call_operand.vmem [shape: f32[1,32], index: 15, kind: input, shape index: {}]
  %s16 = inlined_call_operand.vmem [shape: f32[32,32], index: 16, kind: input, shape index: {}]
  %s17 = inlined_call_operand.vmem [shape: f32[1,32], index: 17, kind: input, shape index: {}]
  %s18 = inlined_call_operand.vmem [shape: f32[32,128], index: 18, kind: input, shape index: {}]
  %s19 = inlined_call_operand.vmem [shape: f32[1,128], index: 19, kind: input, shape index: {}]
  %s20 = inlined_call_operand.hbm [shape: f32[2,128], index: 20, kind: output, shape index: {}]
  %s21 = sld [smem:[#allocation0]]
  $region94: #{tpu_custom_call.1} parent=0
    _
  %s23 = ssub.s32 1, %s21
  %s24 = scalar_select 0, %s23, %s21
  $region1: #{tpu_custom_call.1} parent=0
    #allocation2 [shape = 'u8[8192]{0}', space=vmem, size = 0x2000, scoped, tag = 'input window, operand 0, single buffered']
    #allocation3 [shape = 's32[1]{0}', space=sflag, size = 0x4, scoped, tag = 'scoped memory for tpu_custom_call.1']
    #allocation4 [shape = 's32[1]{0}', space=sflag, size = 0x4, scoped, tag = 'scoped memory for tpu_custom_call.1']
    #allocation5 [shape = 'u8[1024]{0}', space=vmem, size = 0x400, scoped, tag = 'output window, operand 0, single buffered']
    %25 = vsyncpa [#allocation3], 0
    %26 = vsyncpa [#allocation4], 0
    // Predicated region
    $region2: #{tpu_custom_call.1} parent=1 // pred_check
      _
    $region3: #{tpu_custom_call.1} parent=1 // pred_check_branch
      %28 = sbr.rel (0) target = $region5
    $region4: #{tpu_custom_call.1} parent=1 // pred_region
      %30 = vsyncadd [#allocation3], 0
      %s31 = sshll.u32 %s0, 4
      %s32 = int_to_ptr.hbm [resolvable:$true] %s31
      %s33 = sshll.u32 [#allocation2], 4
      %s34 = int_to_ptr.vmem [resolvable:$true] %s33
      %39 = dma.hbm_to_vmem [thread:$0]  %s32, 256, %s34, [#allocation3], 128, 128, 8
    $region5: #{tpu_custom_call.1} parent=1 // pred_fallthru
      _
    // Predicated region
    $region6: #{tpu_custom_call.1} parent=1 // pred_check
      _
    $region7: #{tpu_custom_call.1} parent=1 // pred_check_branch
      %41 = sbr.rel (0) target = $region9
    $region8: #{tpu_custom_call.1} parent=1 // pred_region
      _
    $region9: #{tpu_custom_call.1} parent=1 // pred_fallthru
      _
    // Predicated region
    $region10: #{tpu_custom_call.1} parent=1 // pred_check
      _
    $region11: #{tpu_custom_call.1} parent=1 // pred_check_branch
      %43 = sbr.rel (0) target = $region13
    $region12: #{tpu_custom_call.1} parent=1 // pred_region
      _
    $region13: #{tpu_custom_call.1} parent=1 // pred_fallthru
      _
    // Predicated region
    $region14: #{tpu_custom_call.1} parent=1 // pred_check
      _
    $region15: #{tpu_custom_call.1} parent=1 // pred_check_branch
      %45 = sbr.rel (0) target = $region17
    $region16: #{tpu_custom_call.1} parent=1 // pred_region
      _
    $region17: #{tpu_custom_call.1} parent=1 // pred_fallthru
      _
    // Predicated region
    $region18: #{tpu_custom_call.1} parent=1 // pred_check
      _
    $region19: #{tpu_custom_call.1} parent=1 // pred_check_branch
      %47 = sbr.rel (0) target = $region21
    $region20: #{tpu_custom_call.1} parent=1 // pred_region
      _
    $region21: #{tpu_custom_call.1} parent=1 // pred_fallthru
      _
    // Predicated region
    $region22: #{tpu_custom_call.1} parent=1 // pred_check
      _
    $region23: #{tpu_custom_call.1} parent=1 // pred_check_branch
      %49 = sbr.rel (0) target = $region25
    $region24: #{tpu_custom_call.1} parent=1 // pred_region
      _
    $region25: #{tpu_custom_call.1} parent=1 // pred_fallthru
      _
    // Predicated region
    $region26: #{tpu_custom_call.1} parent=1 // pred_check
      _
    $region27: #{tpu_custom_call.1} parent=1 // pred_check_branch
      %51 = sbr.rel (0) target = $region29
    $region28: #{tpu_custom_call.1} parent=1 // pred_region
      _
    $region29: #{tpu_custom_call.1} parent=1 // pred_fallthru
      _
    // Predicated region
    $region30: #{tpu_custom_call.1} parent=1 // pred_check
      _
    $region31: #{tpu_custom_call.1} parent=1 // pred_check_branch
      %53 = sbr.rel (0) target = $region33
    $region32: #{tpu_custom_call.1} parent=1 // pred_region
      _
    $region33: #{tpu_custom_call.1} parent=1 // pred_fallthru
      _
    // Predicated region
    $region34: #{tpu_custom_call.1} parent=1 // pred_check
      _
    $region35: #{tpu_custom_call.1} parent=1 // pred_check_branch
      %55 = sbr.rel (0) target = $region37
    $region36: #{tpu_custom_call.1} parent=1 // pred_region
      _
    $region37: #{tpu_custom_call.1} parent=1 // pred_fallthru
      _
    // Predicated region
    $region38: #{tpu_custom_call.1} parent=1 // pred_check
      _
    $region39: #{tpu_custom_call.1} parent=1 // pred_check_branch
      %57 = sbr.rel (0) target = $region41
    $region40: #{tpu_custom_call.1} parent=1 // pred_region
      _
    $region41: #{tpu_custom_call.1} parent=1 // pred_fallthru
      _
    // Predicated region
    $region42: #{tpu_custom_call.1} parent=1 // pred_check
      _
    $region43: #{tpu_custom_call.1} parent=1 // pred_check_branch
      %59 = sbr.rel (0) target = $region45
    $region44: #{tpu_custom_call.1} parent=1 // pred_region
      _
    $region45: #{tpu_custom_call.1} parent=1 // pred_fallthru
      _
    // Predicated region
    $region46: #{tpu_custom_call.1} parent=1 // pred_check
      _
    $region47: #{tpu_custom_call.1} parent=1 // pred_check_branch
      %61 = sbr.rel (0) target = $region49
    $region48: #{tpu_custom_call.1} parent=1 // pred_region
      _
    $region49: #{tpu_custom_call.1} parent=1 // pred_fallthru
      _
    // Predicated region
    $region50: #{tpu_custom_call.1} parent=1 // pred_check
      _
    $region51: #{tpu_custom_call.1} parent=1 // pred_check_branch
      %63 = sbr.rel (0) target = $region53
    $region52: #{tpu_custom_call.1} parent=1 // pred_region
      _
    $region53: #{tpu_custom_call.1} parent=1 // pred_fallthru
      _
    // Predicated region
    $region54: #{tpu_custom_call.1} parent=1 // pred_check
      _
    $region55: #{tpu_custom_call.1} parent=1 // pred_check_branch
      %65 = sbr.rel (0) target = $region57
    $region56: #{tpu_custom_call.1} parent=1 // pred_region
      _
    $region57: #{tpu_custom_call.1} parent=1 // pred_fallthru
      _
    // Predicated region
    $region58: #{tpu_custom_call.1} parent=1 // pred_check
      _
    $region59: #{tpu_custom_call.1} parent=1 // pred_check_branch
      %67 = sbr.rel (0) target = $region61
    $region60: #{tpu_custom_call.1} parent=1 // pred_region
      _
    $region61: #{tpu_custom_call.1} parent=1 // pred_fallthru
      _
    // Predicated region
    $region62: #{tpu_custom_call.1} parent=1 // pred_check
      _
    $region63: #{tpu_custom_call.1} parent=1 // pred_check_branch
      %69 = sbr.rel (0) target = $region65
    $region64: #{tpu_custom_call.1} parent=1 // pred_region
      _
    $region65: #{tpu_custom_call.1} parent=1 // pred_fallthru
      _
    // Predicated region
    $region66: #{tpu_custom_call.1} parent=1 // pred_check
      _
    $region67: #{tpu_custom_call.1} parent=1 // pred_check_branch
      %71 = sbr.rel (0) target = $region69
    $region68: #{tpu_custom_call.1} parent=1 // pred_region
      _
    $region69: #{tpu_custom_call.1} parent=1 // pred_fallthru
      _
    // Predicated region
    $region70: #{tpu_custom_call.1} parent=1 // pred_check
      _
    $region71: #{tpu_custom_call.1} parent=1 // pred_check_branch
      %73 = sbr.rel (0) target = $region73
    $region72: #{tpu_custom_call.1} parent=1 // pred_region
      _
    $region73: #{tpu_custom_call.1} parent=1 // pred_fallthru
      _
    // Predicated region
    $region74: #{tpu_custom_call.1} parent=1 // pred_check
      _
    $region75: #{tpu_custom_call.1} parent=1 // pred_check_branch
      %75 = sbr.rel (0) target = $region77
    $region76: #{tpu_custom_call.1} parent=1 // pred_region
      _
    $region77: #{tpu_custom_call.1} parent=1 // pred_fallthru
      _
    // Predicated region
    $region78: #{tpu_custom_call.1} parent=1 // pred_check
      _
    $region79: #{tpu_custom_call.1} parent=1 // pred_check_branch
      %77 = sbr.rel (0) target = $region81
    $region80: #{tpu_custom_call.1} parent=1 // pred_region
      _
    $region81: #{tpu_custom_call.1} parent=1 // pred_fallthru
      _
    // Predicated region
    $region82: #{tpu_custom_call.1} parent=1 // pred_check
      _
    $region83: #{tpu_custom_call.1} parent=1 // pred_check_branch
      %79 = sbr.rel (0) target = $region85
    $region84: #{tpu_custom_call.1} parent=1 // pred_region
      %81 = dma.done [#allocation3], 256
    $region85: #{tpu_custom_call.1} parent=1 // pred_fallthru
      _
    %v82 = vld [vmem:[#allocation2] sm:$0xff]
    %v83 = vld [vmem:[#allocation2 + $0x8] sm:$0xff]
    %vm84 = vcmask 261120
    %v85 = vsel %vm84, %v82, 0.0
    %86 = vadd.xlane.f32.xlu0 %v85
    %v87 = vpop.xlane.xlu0 %86
    %v88 = vsel %vm84, %v83, 0.0
    %89 = vadd.xlane.f32.xlu0 %v88
    %v90 = vpop.xlane.xlu0 %89
    %v91 = vrcp.pop 32.0
    %v92 = vmul.f32 32.0, %v91
    %v93 = vsub.f32 1.0, %v92
    %v94 = vmul.f32 %v91, %v93
    %v95 = vadd.f32 %v91, %v94
    %vm96 = vweird.f32 %v91
    %v97 = vsel %vm96, %v91, %v95
    %v98 = vmul.f32 %v87, %v97
    %v99 = vmul.f32 %v90, %v97
    %v100 = vsub.f32 %v82, %v98
    %v101 = vsub.f32 %v83, %v99
    %v102 = vmul.f32 %v100, %v100
    %v103 = vmul.f32 %v101, %v101
    %v104 = vsel %vm84, %v102, 0.0
    %105 = vadd.xlane.f32.xlu0 %v104
    %v106 = vpop.xlane.xlu0 %105
    %v107 = vsel %vm84, %v103, 0.0
    %108 = vadd.xlane.f32.xlu0 %v107
    %v109 = vpop.xlane.xlu0 %108
    %v110 = vmul.f32 %v106, %v97
    %v111 = vmul.f32 %v109, %v97
    %v112 = vadd.f32 %v110, 1e-12
    %v113 = vadd.f32 %v111, 1e-12
    %v114 = vrsqrt.pop %v112
    %v115 = vmul.f32 %v114, %v112
    %v116 = vmul.f32 %v115, %v114
    %v117 = vmul.f32 0.5, %v116
    %v118 = vsub.f32 1.5, %v117
    %v119 = vmul.f32 %v114, %v118
    %vm120 = vweird.f32 %v112
    %vm121 = vweird.f32 %v114
    %vm122 = vmor %vm120, %vm121
    %v123 = vsel %vm122, %v114, %v119
    %v124 = vrsqrt.pop %v113
    %v125 = vmul.f32 %v124, %v113
    %v126 = vmul.f32 %v125, %v124
    %v127 = vmul.f32 0.5, %v126
    %v128 = vsub.f32 1.5, %v127
    %v129 = vmul.f32 %v124, %v128
    %vm130 = vweird.f32 %v113
    %vm131 = vweird.f32 %v124
    %vm132 = vmor %vm130, %vm131
    %v133 = vsel %vm132, %v124, %v129
    %v134 = vmul.f32 %v100, %v123
    %v135 = vmul.f32 %v101, %v133
    %v136 = vld [vmem:[%s2] sm:$0x1]
    %v138 = vperm.slane %v136, 0
    %v140 = vmul.f32 %v134, %v138
    %v141 = vmul.f32 %v135, %v138
    %v142 = vld [vmem:[%s3] sm:$0x1]
    %v144 = vperm.slane %v142, 0
    %v146 = vadd.f32 %v140, %v144
    %v147 = vadd.f32 %v141, %v144
    %v148 = vld [vmem:[%s4] sm:$0xff]
    %v149 = vld [vmem:[%s4 + $0x8] sm:$0xff]
    %v150 = vld [vmem:[%s4 + $0x10] sm:$0xff]
    %v151 = vld [vmem:[%s4 + $0x18] sm:$0xff]
    %v152 = vld [vmem:[%s5] sm:$0x1]
    %v154 = vperm.slane %v152, 0
    %v157 = vsel %vm84, %v146, 0
    %v160 = vsel %vm84, %v147, 0
    %162 = vmatpush.msra.mxu0 0.0
    %163 = vmatpush.msra.mxu0 0.0
    %164 = vmatpush.msra.mxu0 0.0
    %165 = vmatpush.msra.mxu0 0.0
    %166 = vmatpush.msra.mxu0 0.0
    %167 = vmatpush.msra.mxu0 0.0
    %168 = vmatpush.msra.mxu0 0.0
    %169 = vmatpush.msra.mxu0 0.0
    %170 = vmatpush.msra.mxu0 0.0
    %171 = vmatpush.msra.mxu0 0.0
    %172 = vmatpush.msra.mxu0 0.0
    %173 = vmatpush.msra.mxu0 0.0
    %174 = vmatpush.msra.mxu0 %v151
    %175 = vmatpush.msra.mxu0 %v150
    %176 = vmatpush.msra.mxu0 %v149
    %177 = vmatpush.msra.mxu0 %v148
    %178 = vmatmul.f32.gmra.mxu0 %v157
    %v179 = vpop.f32.mrf.mxu0
    %v180 = vadd.f32 %v154, %v179
    %181 = vmatmul.f32.gmra.mxu0 %v160
    %v182 = vpop.f32.mrf.mxu0
    %v183 = vadd.f32 %v154, %v182
    %184 = vdwg.mxu0
    %186 = vrot.lane.b32.xlu0 %v180, 96
    %v187 = vpop.permute.xlu0 %186
    %v188 = vsel %vm84, %v180, 0
    %v190 = vsel %vm84, %v187, 0
    %192 = vmatpush.xpose.msra.mxu0 0.0
    %193 = vmatpush.xpose.msra.mxu0 0.0
    %194 = vmatpush.xpose.msra.mxu0 0.0
    %195 = vmatpush.xpose.msra.mxu0 0.0
    %196 = vmatpush.xpose.msra.mxu0 0.0
    %197 = vmatpush.xpose.msra.mxu0 0.0
    %198 = vmatpush.xpose.msra.mxu0 0.0
    %199 = vmatpush.xpose.msra.mxu0 0.0
    %200 = vmatpush.xpose.msra.mxu0 0.0
    %201 = vmatpush.xpose.msra.mxu0 0.0
    %202 = vmatpush.xpose.msra.mxu0 0.0
    %203 = vmatpush.xpose.msra.mxu0 0.0
    %204 = vmatpush.xpose.msra.mxu0 0.0
    %205 = vmatpush.xpose.msra.mxu0 0.0
    %206 = vmatpush.xpose.msra.mxu0 0.0
    %207 = vmatpush.xpose.msra.mxu0 %v190
    %208 = vmatmul.f32.gmra.mxu0 %v188
    %v209 = vpop.f32.mrf.mxu0
    %v210 = vadd.f32 0.0, %v209
    %211 = vdwg.mxu0
    %213 = vrot.lane.b32.xlu0 %v183, 96
    %v214 = vpop.permute.xlu0 %213
    %v215 = vsel %vm84, %v183, 0
    %v217 = vsel %vm84, %v214, 0
    %219 = vmatpush.xpose.msra.mxu0 0.0
    %220 = vmatpush.xpose.msra.mxu0 0.0
    %221 = vmatpush.xpose.msra.mxu0 0.0
    %222 = vmatpush.xpose.msra.mxu0 0.0
    %223 = vmatpush.xpose.msra.mxu0 0.0
    %224 = vmatpush.xpose.msra.mxu0 0.0
    %225 = vmatpush.xpose.msra.mxu0 0.0
    %226 = vmatpush.xpose.msra.mxu0 0.0
    %227 = vmatpush.xpose.msra.mxu0 0.0
    %228 = vmatpush.xpose.msra.mxu0 0.0
    %229 = vmatpush.xpose.msra.mxu0 0.0
    %230 = vmatpush.xpose.msra.mxu0 0.0
    %231 = vmatpush.xpose.msra.mxu0 0.0
    %232 = vmatpush.xpose.msra.mxu0 0.0
    %233 = vmatpush.xpose.msra.mxu0 0.0
    %234 = vmatpush.xpose.msra.mxu0 %v217
    %235 = vmatmul.f32.gmra.mxu0 %v215
    %v236 = vpop.f32.mrf.mxu0
    %v237 = vadd.f32 0.0, %v236
    %238 = vdwg.mxu0
    %v239 = vmul.f32 %v210, 0.17677669
    %v240 = vmul.f32 %v237, 0.17677669
    %v241 = vld [vmem:[%s1] sm:$0x3]
    %v242 = vrot.slane %v241, 1
    %v243 = vlaneseq
    %v244 = vand.u32 %v243, 127
    %v245 = vperm.slane %v241, 0
    %v246 = vperm.slane %v242, 0
    %247 = vset.pattern.permute.xlu0 0
    %248 = vperm.xlu0 %247, %v245
    %v249 = vpop.permute.xlu0 %248
    %250 = vset.pattern.permute.xlu0 0
    %251 = vperm.xlu0 %250, %v246
    %v252 = vpop.permute.xlu0 %251
    %vm253 = vcmp.lt.s32.totalorder %v244, %v249
    %vm254 = vcmp.lt.s32.totalorder %v244, %v252
    %v255 = vsel %vm253, %v239, -1e+09
    %v256 = vsel %vm254, %v240, -1e+09
    %vm257 = vcmask 64512
    %v258 = vsel %vm257, %v255, -inf
    %259 = vmax.xlane.f32.xlu0 %v258
    %v260 = vpop.xlane.xlu0 %259
    %v261 = vsel %vm257, %v256, -inf
    %262 = vmax.xlane.f32.xlu0 %v261
    %v263 = vpop.xlane.xlu0 %262
    %v264 = vsub.f32 %v255, %v260
    %v265 = vsub.f32 %v256, %v263
    %v266 = vmul.f32 %v264, 1.442695
    %v267 = vpow.pop %v266
    %v268 = vmul.f32 %v265, 1.442695
    %v269 = vpow.pop %v268
    %v270 = vsel %vm257, %v267, 0.0
    %271 = vadd.xlane.f32.xlu0 %v270
    %v272 = vpop.xlane.xlu0 %271
    %v273 = vsel %vm257, %v269, 0.0
    %274 = vadd.xlane.f32.xlu0 %v273
    %v275 = vpop.xlane.xlu0 %274
    %v276 = vrcp.pop %v272
    %v277 = vmul.f32 %v272, %v276
    %v278 = vsub.f32 1.0, %v277
    %v279 = vmul.f32 %v276, %v278
    %v280 = vadd.f32 %v276, %v279
    %vm281 = vweird.f32 %v272
    %vm282 = vweird.f32 %v276
    %vm283 = vmor %vm281, %vm282
    %v284 = vsel %vm283, %v276, %v280
    %v285 = vand.u32 2147483647, %v272
    %vm286 = vcmp.eq.f32.partialorder %v285, 8.507059e+37
    %v287 = vand.u32 %v272, 2147483648
    %v288 = vor.u32 1.1754944e-38, %v287
    %v289 = vsel %vm286, %v288, %v284
    %v290 = vmul.f32 %v267, %v289
    %v291 = vrcp.pop %v275
    %v292 = vmul.f32 %v275, %v291
    %v293 = vsub.f32 1.0, %v292
    %v294 = vmul.f32 %v291, %v293
    %v295 = vadd.f32 %v291, %v294
    %vm296 = vweird.f32 %v275
    %vm297 = vweird.f32 %v291
    %vm298 = vmor %vm296, %vm297
    %v299 = vsel %vm298, %v291, %v295
    %v300 = vand.u32 2147483647, %v275
    %vm301 = vcmp.eq.f32.partialorder %v300, 8.507059e+37
    %v302 = vand.u32 %v275, 2147483648
    %v303 = vor.u32 1.1754944e-38, %v302
    %v304 = vsel %vm301, %v303, %v299
    %v305 = vmul.f32 %v269, %v304
    %306 = vrot.lane.b32.xlu0 %v180, 64
    %v307 = vpop.permute.xlu0 %306
    %v310 = vsel %vm257, %v290, 0
    %312 = vmatpush.msra.mxu0 0.0
    %313 = vmatpush.msra.mxu0 0.0
    %314 = vmatpush.msra.mxu0 0.0
    %315 = vmatpush.msra.mxu0 0.0
    %316 = vmatpush.msra.mxu0 0.0
    %317 = vmatpush.msra.mxu0 0.0
    %318 = vmatpush.msra.mxu0 0.0
    %319 = vmatpush.msra.mxu0 0.0
    %320 = vmatpush.msra.mxu0 0.0
    %321 = vmatpush.msra.mxu0 0.0
    %322 = vmatpush.msra.mxu0 0.0
    %323 = vmatpush.msra.mxu0 0.0
    %324 = vmatpush.msra.mxu0 0.0
    %325 = vmatpush.msra.mxu0 0.0
    %326 = vmatpush.msra.mxu0 0.0
    %327 = vmatpush.msra.mxu0 %v307
    %328 = vmatmul.f32.gmra.mxu0 %v310
    %v329 = vpop.f32.mrf.mxu0
    %v330 = vadd.f32 0.0, %v329
    %331 = vdwg.mxu0
    %332 = vrot.lane.b32.xlu0 %v183, 64
    %v333 = vpop.permute.xlu0 %332
    %v336 = vsel %vm257, %v305, 0
    %338 = vmatpush.msra.mxu0 0.0
    %339 = vmatpush.msra.mxu0 0.0
    %340 = vmatpush.msra.mxu0 0.0
    %341 = vmatpush.msra.mxu0 0.0
    %342 = vmatpush.msra.mxu0 0.0
    %343 = vmatpush.msra.mxu0 0.0
    %344 = vmatpush.msra.mxu0 0.0
    %345 = vmatpush.msra.mxu0 0.0
    %346 = vmatpush.msra.mxu0 0.0
    %347 = vmatpush.msra.mxu0 0.0
    %348 = vmatpush.msra.mxu0 0.0
    %349 = vmatpush.msra.mxu0 0.0
    %350 = vmatpush.msra.mxu0 0.0
    %351 = vmatpush.msra.mxu0 0.0
    %352 = vmatpush.msra.mxu0 0.0
    %353 = vmatpush.msra.mxu0 %v333
    %354 = vmatmul.f32.gmra.mxu0 %v336
    %v355 = vpop.f32.mrf.mxu0
    %v356 = vadd.f32 0.0, %v355
    %357 = vdwg.mxu0
    %v358 = vld [vmem:[%s6] sm:$0xff]
    %v359 = vld [vmem:[%s6 + $0x8] sm:$0xff]
    %v360 = vld [vmem:[%s6 + $0x10] sm:$0xff]
    %v361 = vld [vmem:[%s6 + $0x18] sm:$0xff]
    %v362 = vld [vmem:[%s7] sm:$0x1]
    %v364 = vperm.slane %v362, 0
    %v367 = vsel %vm84, %v330, 0
    %v370 = vsel %vm84, %v356, 0
    %372 = vmatpush.msra.mxu0 0.0
    %373 = vmatpush.msra.mxu0 0.0
    %374 = vmatpush.msra.mxu0 0.0
    %375 = vmatpush.msra.mxu0 0.0
    %376 = vmatpush.msra.mxu0 0.0
    %377 = vmatpush.msra.mxu0 0.0
    %378 = vmatpush.msra.mxu0 0.0
    %379 = vmatpush.msra.mxu0 0.0
    %380 = vmatpush.msra.mxu0 0.0
    %381 = vmatpush.msra.mxu0 0.0
    %382 = vmatpush.msra.mxu0 0.0
    %383 = vmatpush.msra.mxu0 0.0
    %384 = vmatpush.msra.mxu0 %v361
    %385 = vmatpush.msra.mxu0 %v360
    %386 = vmatpush.msra.mxu0 %v359
    %387 = vmatpush.msra.mxu0 %v358
    %388 = vmatmul.f32.gmra.mxu0 %v367
    %v389 = vpop.f32.mrf.mxu0
    %v390 = vadd.f32 %v364, %v389
    %391 = vmatmul.f32.gmra.mxu0 %v370
    %v392 = vpop.f32.mrf.mxu0
    %v393 = vadd.f32 %v364, %v392
    %394 = vdwg.mxu0
    %v395 = vadd.f32 %v146, %v390
    %v396 = vadd.f32 %v147, %v393
    %v397 = vsel %vm84, %v395, 0.0
    %398 = vadd.xlane.f32.xlu0 %v397
    %v399 = vpop.xlane.xlu0 %398
    %v400 = vsel %vm84, %v396, 0.0
    %401 = vadd.xlane.f32.xlu0 %v400
    %v402 = vpop.xlane.xlu0 %401
    %v403 = vmul.f32 %v399, %v97
    %v404 = vmul.f32 %v402, %v97
    %v405 = vsub.f32 %v395, %v403
    %v406 = vsub.f32 %v396, %v404
    %v407 = vmul.f32 %v405, %v405
    %v408 = vmul.f32 %v406, %v406
    %v409 = vsel %vm84, %v407, 0.0
    %410 = vadd.xlane.f32.xlu0 %v409
    %v411 = vpop.xlane.xlu0 %410
    %v412 = vsel %vm84, %v408, 0.0
    %413 = vadd.xlane.f32.xlu0 %v412
    %v414 = vpop.xlane.xlu0 %413
    %v415 = vmul.f32 %v411, %v97
    %v416 = vmul.f32 %v414, %v97
    %v417 = vadd.f32 %v415, 1e-12
    %v418 = vadd.f32 %v416, 1e-12
    %v419 = vrsqrt.pop %v417
    %v420 = vmul.f32 %v419, %v417
    %v421 = vmul.f32 %v420, %v419
    %v422 = vmul.f32 0.5, %v421
    %v423 = vsub.f32 1.5, %v422
    %v424 = vmul.f32 %v419, %v423
    %vm425 = vweird.f32 %v417
    %vm426 = vweird.f32 %v419
    %vm427 = vmor %vm425, %vm426
    %v428 = vsel %vm427, %v419, %v424
    %v429 = vrsqrt.pop %v418
    %v430 = vmul.f32 %v429, %v418
    %v431 = vmul.f32 %v430, %v429
    %v432 = vmul.f32 0.5, %v431
    %v433 = vsub.f32 1.5, %v432
    %v434 = vmul.f32 %v429, %v433
    %vm435 = vweird.f32 %v418
    %vm436 = vweird.f32 %v429
    %vm437 = vmor %vm435, %vm436
    %v438 = vsel %vm437, %v429, %v434
    %v439 = vmul.f32 %v405, %v428
    %v440 = vmul.f32 %v406, %v438
    %v441 = vld [vmem:[%s8] sm:$0x1]
    %v443 = vperm.slane %v441, 0
    %v445 = vmul.f32 %v439, %v443
    %v446 = vmul.f32 %v440, %v443
    %v447 = vld [vmem:[%s9] sm:$0x1]
    %v449 = vperm.slane %v447, 0
    %v451 = vadd.f32 %v445, %v449
    %v452 = vadd.f32 %v446, %v449
    %v453 = vld [vmem:[%s10] sm:$0xff]
    %v454 = vld [vmem:[%s10 + $0x8] sm:$0xff]
    %v455 = vld [vmem:[%s10 + $0x10] sm:$0xff]
    %v456 = vld [vmem:[%s10 + $0x18] sm:$0xff]
    %v457 = vld [vmem:[%s11] sm:$0x1]
    %v459 = vperm.slane %v457, 0
    %v462 = vsel %vm84, %v451, 0
    %v465 = vsel %vm84, %v452, 0
    %467 = vmatpush.msra.mxu0 0.0
    %468 = vmatpush.msra.mxu0 0.0
    %469 = vmatpush.msra.mxu0 0.0
    %470 = vmatpush.msra.mxu0 0.0
    %471 = vmatpush.msra.mxu0 0.0
    %472 = vmatpush.msra.mxu0 0.0
    %473 = vmatpush.msra.mxu0 0.0
    %474 = vmatpush.msra.mxu0 0.0
    %475 = vmatpush.msra.mxu0 0.0
    %476 = vmatpush.msra.mxu0 0.0
    %477 = vmatpush.msra.mxu0 0.0
    %478 = vmatpush.msra.mxu0 0.0
    %479 = vmatpush.msra.mxu0 %v456
    %480 = vmatpush.msra.mxu0 %v455
    %481 = vmatpush.msra.mxu0 %v454
    %482 = vmatpush.msra.mxu0 %v453
    %483 = vmatmul.f32.gmra.mxu0 %v462
    %v484 = vpop.f32.mrf.mxu0
    %v485 = vadd.f32 %v459, %v484
    %486 = vmatmul.f32.gmra.mxu0 %v465
    %v487 = vpop.f32.mrf.mxu0
    %v488 = vadd.f32 %v459, %v487
    %489 = vdwg.mxu0
    %v490 = vmul.f32 %v485, %v485
    %v491 = vmul.f32 %v488, %v488
    %v492 = vmul.f32 %v485, %v490
    %v493 = vmul.f32 %v488, %v491
    %v494 = vmul.f32 %v492, 0.044715
    %v495 = vmul.f32 %v493, 0.044715
    %v496 = vadd.f32 %v485, %v494
    %v497 = vadd.f32 %v488, %v495
    %v498 = vmul.f32 %v496, 0.7978846
    %v499 = vmul.f32 %v497, 0.7978846
    %v500 = vtanh.pop %v498
    %v501 = vtanh.pop %v499
    %v502 = vadd.f32 %v500, 1.0
    %v503 = vadd.f32 %v501, 1.0
    %v504 = vmul.f32 %v502, 0.5
    %v505 = vmul.f32 %v503, 0.5
    %v506 = vmul.f32 %v485, %v504
    %v507 = vmul.f32 %v488, %v505
    %v508 = vld [vmem:[%s12] sm:$0xff]
    %v509 = vld [vmem:[%s12 + $0x8] sm:$0xff]
    %v510 = vld [vmem:[%s12 + $0x10] sm:$0xff]
    %v511 = vld [vmem:[%s12 + $0x18] sm:$0xff]
    %v512 = vld [vmem:[%s12 + $0x20] sm:$0xff]
    %v513 = vld [vmem:[%s12 + $0x28] sm:$0xff]
    %v514 = vld [vmem:[%s12 + $0x30] sm:$0xff]
    %v515 = vld [vmem:[%s12 + $0x38] sm:$0xff]
    %v516 = vld [vmem:[%s12 + $0x40] sm:$0xff]
    %v517 = vld [vmem:[%s12 + $0x48] sm:$0xff]
    %v518 = vld [vmem:[%s12 + $0x50] sm:$0xff]
    %v519 = vld [vmem:[%s12 + $0x58] sm:$0xff]
    %v520 = vld [vmem:[%s12 + $0x60] sm:$0xff]
    %v521 = vld [vmem:[%s12 + $0x68] sm:$0xff]
    %v522 = vld [vmem:[%s12 + $0x70] sm:$0xff]
    %v523 = vld [vmem:[%s12 + $0x78] sm:$0xff]
    %v524 = vld [vmem:[%s13] sm:$0x1]
    %v526 = vperm.slane %v524, 0
    %528 = vmatpush.msra.mxu0 %v523
    %529 = vmatpush.msra.mxu0 %v522
    %530 = vmatpush.msra.mxu0 %v521
    %531 = vmatpush.msra.mxu0 %v520
    %532 = vmatpush.msra.mxu0 %v519
    %533 = vmatpush.msra.mxu0 %v518
    %534 = vmatpush.msra.mxu0 %v517
    %535 = vmatpush.msra.mxu0 %v516
    %536 = vmatpush.msra.mxu0 %v515
    %537 = vmatpush.msra.mxu0 %v514
    %538 = vmatpush.msra.mxu0 %v513
    %539 = vmatpush.msra.mxu0 %v512
    %540 = vmatpush.msra.mxu0 %v511
    %541 = vmatpush.msra.mxu0 %v510
    %542 = vmatpush.msra.mxu0 %v509
    %543 = vmatpush.msra.mxu0 %v508
    %544 = vmatmul.f32.gmra.mxu0 %v506
    %v545 = vpop.f32.mrf.mxu0
    %v546 = vadd.f32 %v526, %v545
    %547 = vmatmul.f32.gmra.mxu0 %v507
    %v548 = vpop.f32.mrf.mxu0
    %v549 = vadd.f32 %v526, %v548
    %550 = vdwg.mxu0
    %v551 = vadd.f32 %v451, %v546
    %v552 = vadd.f32 %v452, %v549
    %v553 = vsel %vm84, %v551, 0.0
    %554 = vadd.xlane.f32.xlu0 %v553
    %v555 = vpop.xlane.xlu0 %554
    %v556 = vsel %vm84, %v552, 0.0
    %557 = vadd.xlane.f32.xlu0 %v556
    %v558 = vpop.xlane.xlu0 %557
    %v559 = vmul.f32 %v555, %v97
    %v560 = vmul.f32 %v558, %v97
    %v561 = vsub.f32 %v551, %v559
    %v562 = vsub.f32 %v552, %v560
    %v563 = vmul.f32 %v561, %v561
    %v564 = vmul.f32 %v562, %v562
    %v565 = vsel %vm84, %v563, 0.0
    %566 = vadd.xlane.f32.xlu0 %v565
    %v567 = vpop.xlane.xlu0 %566
    %v568 = vsel %vm84, %v564, 0.0
    %569 = vadd.xlane.f32.xlu0 %v568
    %v570 = vpop.xlane.xlu0 %569
    %v571 = vmul.f32 %v567, %v97
    %v572 = vmul.f32 %v570, %v97
    %v573 = vadd.f32 %v571, 1e-12
    %v574 = vadd.f32 %v572, 1e-12
    %v575 = vrsqrt.pop %v573
    %v576 = vmul.f32 %v575, %v573
    %v577 = vmul.f32 %v576, %v575
    %v578 = vmul.f32 0.5, %v577
    %v579 = vsub.f32 1.5, %v578
    %v580 = vmul.f32 %v575, %v579
    %vm581 = vweird.f32 %v573
    %vm582 = vweird.f32 %v575
    %vm583 = vmor %vm581, %vm582
    %v584 = vsel %vm583, %v575, %v580
    %v585 = vrsqrt.pop %v574
    %v586 = vmul.f32 %v585, %v574
    %v587 = vmul.f32 %v586, %v585
    %v588 = vmul.f32 0.5, %v587
    %v589 = vsub.f32 1.5, %v588
    %v590 = vmul.f32 %v585, %v589
    %vm591 = vweird.f32 %v574
    %vm592 = vweird.f32 %v585
    %vm593 = vmor %vm591, %vm592
    %v594 = vsel %vm593, %v585, %v590
    %v595 = vmul.f32 %v561, %v584
    %v596 = vmul.f32 %v562, %v594
    %v597 = vld [vmem:[%s14] sm:$0x1]
    %v599 = vperm.slane %v597, 0
    %v601 = vmul.f32 %v595, %v599
    %v602 = vmul.f32 %v596, %v599
    %v603 = vld [vmem:[%s15] sm:$0x1]
    %v605 = vperm.slane %v603, 0
    %v607 = vadd.f32 %v601, %v605
    %v608 = vadd.f32 %v602, %v605
    %v609 = vld [vmem:[%s16] sm:$0xff]
    %v610 = vld [vmem:[%s16 + $0x8] sm:$0xff]
    %v611 = vld [vmem:[%s16 + $0x10] sm:$0xff]
    %v612 = vld [vmem:[%s16 + $0x18] sm:$0xff]
    %v613 = vld [vmem:[%s17] sm:$0x1]
    %v615 = vperm.slane %v613, 0
    %v619 = vrot.slane %v608, 7
    %vm620 = vcmask 1041409
    %v621 = vsel %vm620, %v619, %v607
    %v622 = vsel %vm84, %v621, 0
    %624 = vmatpush.msra.mxu0 0.0
    %625 = vmatpush.msra.mxu0 0.0
    %626 = vmatpush.msra.mxu0 0.0
    %627 = vmatpush.msra.mxu0 0.0
    %628 = vmatpush.msra.mxu0 0.0
    %629 = vmatpush.msra.mxu0 0.0
    %630 = vmatpush.msra.mxu0 0.0
    %631 = vmatpush.msra.mxu0 0.0
    %632 = vmatpush.msra.mxu0 0.0
    %633 = vmatpush.msra.mxu0 0.0
    %634 = vmatpush.msra.mxu0 0.0
    %635 = vmatpush.msra.mxu0 0.0
    %636 = vmatpush.msra.mxu0 %v612
    %637 = vmatpush.msra.mxu0 %v611
    %638 = vmatpush.msra.mxu0 %v610
    %639 = vmatpush.msra.mxu0 %v609
    %640 = vmatmul.f32.gmra.mxu0 %v622
    %v641 = vpop.f32.mrf.mxu0
    %v642 = vadd.f32 %v615, %v641
    %643 = vdwg.mxu0
    %v644 = vtanh.pop %v642
    %v645 = vld [vmem:[%s18] sm:$0xff]
    %v646 = vld [vmem:[%s18 + $0x8] sm:$0xff]
    %v647 = vld [vmem:[%s18 + $0x10] sm:$0xff]
    %v648 = vld [vmem:[%s18 + $0x18] sm:$0xff]
    %v649 = vld [vmem:[%s19] sm:$0x1]
    %v651 = vperm.slane %v649, 0
    %v654 = vsel %vm84, %v644, 0
    %656 = vmatpush.msra.mxu0 0.0
    %657 = vmatpush.msra.mxu0 0.0
    %658 = vmatpush.msra.mxu0 0.0
    %659 = vmatpush.msra.mxu0 0.0
    %660 = vmatpush.msra.mxu0 0.0
    %661 = vmatpush.msra.mxu0 0.0
    %662 = vmatpush.msra.mxu0 0.0
    %663 = vmatpush.msra.mxu0 0.0
    %664 = vmatpush.msra.mxu0 0.0
    %665 = vmatpush.msra.mxu0 0.0
    %666 = vmatpush.msra.mxu0 0.0
    %667 = vmatpush.msra.mxu0 0.0
    %668 = vmatpush.msra.mxu0 %v648
    %669 = vmatpush.msra.mxu0 %v647
    %670 = vmatpush.msra.mxu0 %v646
    %671 = vmatpush.msra.mxu0 %v645
    %672 = vmatmul.f32.gmra.mxu0 %v654
    %v673 = vpop.f32.mrf.mxu0
    %v674 = vadd.f32 %v651, %v673
    %675 = vdwg.mxu0
    %676 = vst [vmem:[#allocation5] sm:$0x3] %v674
    // Predicated region
    $region86: #{tpu_custom_call.1} parent=1 // pred_check
      _
    $region87: #{tpu_custom_call.1} parent=1 // pred_check_branch
      %678 = sbr.rel (0) target = $region89
    $region88: #{tpu_custom_call.1} parent=1 // pred_region
      %680 = vsyncadd [#allocation4], 0
      %s682 = sshll.u32 [#allocation5], 4
      %s683 = int_to_ptr.vmem [resolvable:$true] %s682
      %s684 = sshll.u32 %s20, 4
      %s685 = int_to_ptr.hbm [resolvable:$true] %s684
      %687 = dma.vmem_to_hbm [thread:$0]  %s683, 32, %s685, [#allocation4]
    $region89: #{tpu_custom_call.1} parent=1 // pred_fallthru
      _
    // Predicated region
    $region90: #{tpu_custom_call.1} parent=1 // pred_check
      _
    $region91: #{tpu_custom_call.1} parent=1 // pred_check_branch
      %689 = sbr.rel (0) target = $region93
    $region92: #{tpu_custom_call.1} parent=1 // pred_region
      %691 = dma.done [#allocation4], 32
    $region93: #{tpu_custom_call.1} parent=1 // pred_fallthru
      _
    %692 = vsyncpa [#allocation3], 1
    %693 = vsyncpa [#allocation4], 1

</llo_original>
